<compile_context>
chip_gen: v7x
topology: tpu7x:2x2x1
jax: 0.10.0
libtpu: 0.0.40
codegen_flags: <defaults>
</compile_context>

<pallas_src>
import jax
import jax.numpy as jnp
from jax.experimental import pallas as pl
from jax.experimental.pallas import tpu as pltpu


def _round_up(n, m):
    return ((n + m - 1) // m) * m


def _exc_kernel(x_ref, wea_ref, bea_ref, wds_ref, bds_ref, s_ref, ct_ref, o_ref):
    x = x_ref[...]                      # (TM, idim), matmul dtype
    wea = wea_ref[...]                  # (idim, C*hdim), matmul dtype
    wds = wds_ref[...]                  # (C*hdim, idim), matmul dtype
    tm = x.shape[0]
    C = s_ref.shape[1]

    # --- encoder for all C shift-trunks at once (shift folded into We_all) ---
    h = jnp.dot(x, wea, preferred_element_type=jnp.float32) + bea_ref[...]   # (TM, CH) f32

    # --- per-trunk energy: block-sum of h^2 over each hdim column group (MXU) ---
    energy = jnp.dot(h * h, s_ref[...], preferred_element_type=jnp.float32)  # (TM, C)

    # --- first argmax over trunks (matches torch.max tie-breaking) ---
    emax = jnp.max(energy, axis=-1, keepdims=True)                           # (TM, 1)
    iota_c = jax.lax.broadcasted_iota(jnp.int32, (tm, C), 1)
    h_ind = jnp.min(jnp.where(energy == emax, iota_c, C),
                    axis=-1, keepdims=True)                                  # (TM, 1) int32

    # --- keep only the winning trunk's hdim block, then fused decoder+gather ---
    keep = (ct_ref[...] == h_ind).astype(jnp.float32)                        # (TM, CH)
    onehot_c = (iota_c == h_ind).astype(jnp.float32)                         # (TM, C)
    out = jnp.dot((h * keep).astype(wds.dtype), wds,
                  preferred_element_type=jnp.float32)                        # (TM, idim)
    out = out + jnp.dot(onehot_c, bds_ref[...],
                        preferred_element_type=jnp.float32)
    o_ref[...] = out.astype(o_ref.dtype)


def _exc_precompute(we, be, wd, bd, idim, matmul_dtype):
    """Fold pad_for_shift and the shifted gather into the weight matrices."""
    window, hdim = we.shape
    pad = window - idim
    C = pad + 1
    Dout = wd.shape[1]
    # The shifted gather needs columns [Dout-idim-pad, Dout); guard against
    # configurations where static slicing would silently wrap.
    assert Dout >= idim + pad, "decoder width must satisfy Dout >= idim + pad"
    base = Dout - idim

    # We_all[k, c*hdim + j] = we[pad - c + k, j]   (rows hitting padding dropped)
    We_all = jnp.concatenate([we[pad - c: pad - c + idim, :] for c in range(C)],
                             axis=1)                                  # (idim, C*hdim)
    be_all = jnp.tile(be, (1, C))                                     # (1, C*hdim)

    # Wd_shift[c*hdim + j, k] = wd[j, base - c + k];  bd_shift[c, k] = bd[base - c + k]
    Wd_shift = jnp.concatenate([wd[:, base - c: base - c + idim] for c in range(C)],
                               axis=0)                                # (C*hdim, idim)
    bd_shift = jnp.stack([bd[0, base - c: base - c + idim] for c in range(C)],
                         axis=0)                                      # (C, idim)

    # Block-sum matrix (energy) and column->trunk ids (one-hot mask expansion).
    S = (jnp.arange(C * hdim)[:, None] // hdim
         == jnp.arange(C)[None, :]).astype(jnp.float32)               # (C*hdim, C)
    col_trunk = (jnp.arange(C * hdim, dtype=jnp.int32) // hdim)[None, :]  # (1, C*hdim)

    return (We_all.astype(matmul_dtype), be_all.astype(jnp.float32),
            Wd_shift.astype(matmul_dtype), bd_shift.astype(jnp.float32),
            S, col_trunk, C, hdim)


def exc_inference_pallas(x, params, *, block_rows=1024, matmul_dtype=jnp.float32):
    """x: (B, T, idim) f32.  params = (W_enc^T, b_enc, W_dec^T, b_dec).

    block_rows: row tile (default 1024 keeps ~9 MB of intermediates -> safe on
    v5e/v6e/v7x).  matmul_dtype=jnp.bfloat16 uses bf16 MXU operands (v6e/v7x);
    elementwise math stays f32.
    """
    we, be, wd, bd = params
    B, T, idim = x.shape
    out_dtype = x.dtype

    (We_all, be_all, Wd_shift, bd_shift, S, col_trunk, C, hdim) = _exc_precompute(
        we, be, wd, bd, idim, matmul_dtype)
    CH = C * hdim

    N = B * T
    tm = min(_round_up(block_rows, 8), _round_up(N, 8))
    N_pad = _round_up(N, tm)
    xf = x.reshape(N, idim)
    if N_pad != N:
        xf = jnp.pad(xf, ((0, N_pad - N), (0, 0)))   # padded rows sliced off below
    xf = xf.astype(matmul_dtype)

    cost = pl.CostEstimate(
        flops=int(2 * N_pad * CH * idim        # encoder
                  + N_pad * CH                 # squaring
                  + 2 * N_pad * CH * C         # energy block-sum
                  + 2 * N_pad * CH * idim      # fused decoder + gather
                  + 2 * N_pad * C * idim),     # bias gather
        transcendentals=0,
        bytes_accessed=int(xf.nbytes + N_pad * idim * jnp.dtype(out_dtype).itemsize
                           + We_all.nbytes + be_all.nbytes + Wd_shift.nbytes
                           + bd_shift.nbytes + S.nbytes + col_trunk.nbytes),
    )

    out = pl.pallas_call(
        _exc_kernel,
        out_shape=jax.ShapeDtypeStruct((N_pad, idim), out_dtype),
        grid=(N_pad // tm,),
        in_specs=[
            pl.BlockSpec((tm, idim), lambda i: (i, 0)),     # x rows
            pl.BlockSpec((idim, CH), lambda i: (0, 0)),     # We_all
            pl.BlockSpec((1, CH), lambda i: (0, 0)),        # be_all
            pl.BlockSpec((CH, idim), lambda i: (0, 0)),     # Wd_shift
            pl.BlockSpec((C, idim), lambda i: (0, 0)),      # bd_shift
            pl.BlockSpec((CH, C), lambda i: (0, 0)),        # block-sum matrix
            pl.BlockSpec((1, CH), lambda i: (0, 0)),        # column -> trunk ids
        ],
        out_specs=pl.BlockSpec((tm, idim), lambda i: (i, 0)),
        compiler_params=pltpu.CompilerParams(
            dimension_semantics=("parallel",)),
        cost_estimate=cost,
    )(xf, We_all, be_all, Wd_shift, bd_shift, S, col_trunk)
    return out[:N].reshape(B, T, idim)


def exc_inference_ref(x, params):
    """Pure-JAX reference of the same forward pass (f32)."""
    we, be, wd, bd = params
    B, T, idim = x.shape
    window = we.shape[0]
    pad = window - idim
    C = pad + 1
    xp = jnp.pad(x, ((0, 0), (0, 0), (pad, pad)))
    trunks = jnp.stack([xp[..., c:c + window] for c in range(C)], axis=-2)
    h = jnp.einsum("btcw,wh->btch", trunks, we) + be[0]
    energy = jnp.sum(h * h, axis=-1)
    h_ind = jnp.argmax(energy, axis=-1)                       # (B, T)
    h_sel = jnp.take_along_axis(h, h_ind[..., None, None], axis=2)[..., 0, :]
    x_ext = h_sel @ wd + bd[0]
    Dout = x_ext.shape[-1]
    cols = (Dout - idim - h_ind)[..., None] + jnp.arange(idim)
    return jnp.take_along_axis(x_ext, cols, axis=-1)


if __name__ == "__main__":
    B, T = 2, 8
    idim = odim = 16
    hdim = 32
    input_extra = idim                 # non-degenerate setting (see NOTE above)
    window = idim + input_extra        # encoder in_features
    Dout = odim * 2                    # decoder out_features

    key = jax.random.PRNGKey(0)
    k1, k2, k3, k4, k5 = jax.random.split(key, 5)
    x = jax.random.normal(k1, (B, T, idim), jnp.float32)
    # Deterministic synthetic parameters (Linear weights stored transposed).
    we = jax.random.normal(k2, (window, hdim), jnp.float32) * 0.1
    be = jax.random.normal(k3, (1, hdim), jnp.float32) * 0.1
    wd = jax.random.normal(k4, (hdim, Dout), jnp.float32) * 0.1
    bd = jax.random.normal(k5, (1, Dout), jnp.float32) * 0.1
    params = (we, be, wd, bd)

    # f32-MXU path: exact check against the pure-JAX reference.
    out = jax.block_until_ready(exc_inference_pallas(x, params))
    ref = exc_inference_ref(x, params)
    assert out.shape == (B, T, odim), out.shape
    assert jnp.allclose(out, ref, rtol=1e-3, atol=1e-3), "mismatch vs reference"

    # bf16-MXU-operand path (v6e/v7x throughput): numerics differ slightly and
    # near-tie argmax rows can legitimately pick a different trunk, so only
    # sanity-check shape / finiteness here.
    out_bf16 = jax.block_until_ready(
        exc_inference_pallas(x, params, matmul_dtype=jnp.bfloat16))
    assert out_bf16.shape == (B, T, odim), out_bf16.shape
    assert bool(jnp.all(jnp.isfinite(out_bf16)))

    print("KERNEL_OK")
</pallas_src>

<mosaic_0001>
module attributes {stable_mosaic.version = 11 : i64} {
  func.func @_exc_kernel(%arg0: i32, %arg1: memref<16x16xf32, #tpu.memory_space<vmem>>, %arg2: memref<16x544xf32, #tpu.memory_space<vmem>>, %arg3: memref<1x544xf32, #tpu.memory_space<vmem>>, %arg4: memref<544x16xf32, #tpu.memory_space<vmem>>, %arg5: memref<17x16xf32, #tpu.memory_space<vmem>>, %arg6: memref<544x17xf32, #tpu.memory_space<vmem>>, %arg7: memref<1x544xi32, #tpu.memory_space<vmem>>, %arg8: memref<16x16xf32, #tpu.memory_space<vmem>>) attributes {dimension_semantics = [#tpu.dimension_semantics<parallel>], iteration_bounds = array<i64: 1>, scalar_prefetch = 0 : i64, scratch_operands = 0 : i64, tpu.core_type = #tpu.core_type<tc>, window_params = [{transform_indices = @transform_0, window_bounds = array<i64: 16, 16>}, {pipeline_mode = #tpu.pipeline_mode<synchronous>, transform_indices = @transform_1, window_bounds = array<i64: 16, 544>}, {pipeline_mode = #tpu.pipeline_mode<synchronous>, transform_indices = @transform_2, window_bounds = array<i64: 1, 544>}, {pipeline_mode = #tpu.pipeline_mode<synchronous>, transform_indices = @transform_3, window_bounds = array<i64: 544, 16>}, {pipeline_mode = #tpu.pipeline_mode<synchronous>, transform_indices = @transform_4, window_bounds = array<i64: 17, 16>}, {pipeline_mode = #tpu.pipeline_mode<synchronous>, transform_indices = @transform_5, window_bounds = array<i64: 544, 17>}, {pipeline_mode = #tpu.pipeline_mode<synchronous>, transform_indices = @transform_6, window_bounds = array<i64: 1, 544>}, {transform_indices = @transform_7, window_bounds = array<i64: 16, 16>}]} {
    %c0 = arith.constant 0 : index
    %c0_0 = arith.constant 0 : index
    %0 = vector.load %arg1[%c0, %c0_0] : memref<16x16xf32, #tpu.memory_space<vmem>>, vector<16x16xf32>
    %c0_1 = arith.constant 0 : index
    %c0_2 = arith.constant 0 : index
    %1 = vector.load %arg2[%c0_1, %c0_2] : memref<16x544xf32, #tpu.memory_space<vmem>>, vector<16x544xf32>
    %c0_3 = arith.constant 0 : index
    %c0_4 = arith.constant 0 : index
    %2 = vector.load %arg4[%c0_3, %c0_4] : memref<544x16xf32, #tpu.memory_space<vmem>>, vector<544x16xf32>
    %cst = arith.constant dense<0.000000e+00> : vector<16x544xf32>
    %3 = tpu.matmul %0, %1, %cst {dimension_numbers = #tpu.dot_dimension_numbers<[1], [0], [0], [1], [0, 0, 1, 1], [], []>} : vector<16x16xf32>, vector<16x544xf32>, vector<16x544xf32> -> vector<16x544xf32>
    %c0_5 = arith.constant 0 : index
    %c0_6 = arith.constant 0 : index
    %4 = vector.load %arg3[%c0_5, %c0_6] : memref<1x544xf32, #tpu.memory_space<vmem>>, vector<1x544xf32>
    %5 = vector.broadcast %4 : vector<1x544xf32> to vector<16x544xf32>
    %6 = arith.addf %3, %5 : vector<16x544xf32>
    %7 = arith.mulf %6, %6 : vector<16x544xf32>
    %c0_7 = arith.constant 0 : index
    %c0_8 = arith.constant 0 : index
    %8 = vector.load %arg6[%c0_7, %c0_8] : memref<544x17xf32, #tpu.memory_space<vmem>>, vector<544x17xf32>
    %cst_9 = arith.constant dense<0.000000e+00> : vector<16x17xf32>
    %9 = tpu.matmul %7, %8, %cst_9 {dimension_numbers = #tpu.dot_dimension_numbers<[1], [0], [0], [1], [0, 0, 1, 1], [], []>} : vector<16x544xf32>, vector<544x17xf32>, vector<16x17xf32> -> vector<16x17xf32>
    %cst_10 = arith.constant dense<0xFF800000> : vector<16xf32>
    %10 = vector.multi_reduction <maximumf>, %9, %cst_10 [1] : vector<16x17xf32> to vector<16xf32>
    %11 = vector.shape_cast %10 : vector<16xf32> to vector<16x1xf32>
    %12 = tpu.iota {dimensions = array<i32: 1>} : vector<16x17xi32>
    %13 = vector.broadcast %11 : vector<16x1xf32> to vector<16x17xf32>
    %14 = arith.cmpf oeq, %9, %13 : vector<16x17xf32>
    %c17_i32 = arith.constant 17 : i32
    %15 = vector.broadcast %c17_i32 : i32 to vector<16x17xi32>
    %16 = arith.select %14, %12, %15 : vector<16x17xi1>, vector<16x17xi32>
    %cst_11 = arith.constant dense<2147483647> : vector<16xi32>
    %17 = vector.multi_reduction <minsi>, %16, %cst_11 [1] : vector<16x17xi32> to vector<16xi32>
    %18 = vector.shape_cast %17 : vector<16xi32> to vector<16x1xi32>
    %c0_12 = arith.constant 0 : index
    %c0_13 = arith.constant 0 : index
    %19 = vector.load %arg7[%c0_12, %c0_13] : memref<1x544xi32, #tpu.memory_space<vmem>>, vector<1x544xi32>
    %20 = vector.broadcast %19 : vector<1x544xi32> to vector<16x544xi32>
    %21 = vector.broadcast %18 : vector<16x1xi32> to vector<16x544xi32>
    %22 = arith.cmpi eq, %20, %21 : vector<16x544xi32>
    %23 = arith.extui %22 : vector<16x544xi1> to vector<16x544xi32>
    %24 = arith.sitofp %23 : vector<16x544xi32> to vector<16x544xf32>
    %25 = vector.broadcast %18 : vector<16x1xi32> to vector<16x17xi32>
    %26 = arith.cmpi eq, %12, %25 : vector<16x17xi32>
    %27 = arith.extui %26 : vector<16x17xi1> to vector<16x17xi32>
    %28 = arith.sitofp %27 : vector<16x17xi32> to vector<16x17xf32>
    %29 = arith.mulf %6, %24 : vector<16x544xf32>
    %cst_14 = arith.constant dense<0.000000e+00> : vector<16x16xf32>
    %30 = tpu.matmul %29, %2, %cst_14 {dimension_numbers = #tpu.dot_dimension_numbers<[1], [0], [0], [1], [0, 0, 1, 1], [], []>} : vector<16x544xf32>, vector<544x16xf32>, vector<16x16xf32> -> vector<16x16xf32>
    %c0_15 = arith.constant 0 : index
    %c0_16 = arith.constant 0 : index
    %31 = vector.load %arg5[%c0_15, %c0_16] : memref<17x16xf32, #tpu.memory_space<vmem>>, vector<17x16xf32>
    %cst_17 = arith.constant dense<0.000000e+00> : vector<16x16xf32>
    %32 = tpu.matmul %28, %31, %cst_17 {dimension_numbers = #tpu.dot_dimension_numbers<[1], [0], [0], [1], [0, 0, 1, 1], [], []>} : vector<16x17xf32>, vector<17x16xf32>, vector<16x16xf32> -> vector<16x16xf32>
    %33 = arith.addf %30, %32 : vector<16x16xf32>
    %c0_18 = arith.constant 0 : index
    %c0_19 = arith.constant 0 : index
    %34 = vector.load %arg8[%c0_18, %c0_19] : memref<16x16xf32, #tpu.memory_space<vmem>>, vector<16x16xf32>
    tpu.vector_store %arg8[%c0_18, %c0_19], %33 {strides = array<i32>} : memref<16x16xf32, #tpu.memory_space<vmem>>, vector<16x16xf32>,
    return
  }
  func.func @transform_0(%arg0: i32) -> (i32, i32) {
    %c0_i32 = arith.constant 0 : i32
    %c0_i32_0 = arith.constant 0 : i32
    return %arg0, %c0_i32 : i32, i32
  }
  func.func @transform_1(%arg0: i32) -> (i32, i32) {
    %c0_i32 = arith.constant 0 : i32
    %c0_i32_0 = arith.constant 0 : i32
    %c0_i32_1 = arith.constant 0 : i32
    return %c0_i32, %c0_i32_0 : i32, i32
  }
  func.func @transform_2(%arg0: i32) -> (i32, i32) {
    %c0_i32 = arith.constant 0 : i32
    %c0_i32_0 = arith.constant 0 : i32
    %c0_i32_1 = arith.constant 0 : i32
    return %c0_i32, %c0_i32_0 : i32, i32
  }
  func.func @transform_3(%arg0: i32) -> (i32, i32) {
    %c0_i32 = arith.constant 0 : i32
    %c0_i32_0 = arith.constant 0 : i32
    %c0_i32_1 = arith.constant 0 : i32
    return %c0_i32, %c0_i32_0 : i32, i32
  }
  func.func @transform_4(%arg0: i32) -> (i32, i32) {
    %c0_i32 = arith.constant 0 : i32
    %c0_i32_0 = arith.constant 0 : i32
    %c0_i32_1 = arith.constant 0 : i32
    return %c0_i32, %c0_i32_0 : i32, i32
  }
  func.func @transform_5(%arg0: i32) -> (i32, i32) {
    %c0_i32 = arith.constant 0 : i32
    %c0_i32_0 = arith.constant 0 : i32
    %c0_i32_1 = arith.constant 0 : i32
    return %c0_i32, %c0_i32_0 : i32, i32
  }
  func.func @transform_6(%arg0: i32) -> (i32, i32) {
    %c0_i32 = arith.constant 0 : i32
    %c0_i32_0 = arith.constant 0 : i32
    %c0_i32_1 = arith.constant 0 : i32
    return %c0_i32, %c0_i32_0 : i32, i32
  }
  func.func @transform_7(%arg0: i32) -> (i32, i32) {
    %c0_i32 = arith.constant 0 : i32
    %c0_i32_0 = arith.constant 0 : i32
    return %arg0, %c0_i32 : i32, i32
  }
}

</mosaic_0001>

<llo_original>
// kernel: tpu_custom_call.1
$region0: #{tpu_custom_call.1}
  #allocation0 [shape = 'u32[]', space=smem, size = 0x4, offset = 0x4, fixed_abs, tag = 'smem constant byte address 0x4 - core index']
  #allocation1 [shape = 'u32[144,128]{1,0:T(1,128)}', space=vmem, size = 0x12000, scoped, tag = 'internal scratch']
  %s0 = inlined_call_operand.vmem [shape: f32[16,16], index: 0, kind: input, shape index: {}]
  %s1 = inlined_call_operand.vmem [shape: f32[16,544], index: 1, kind: input, shape index: {}]
  %s2 = inlined_call_operand.vmem [shape: f32[1,544], index: 2, kind: input, shape index: {}]
  %s3 = inlined_call_operand.vmem [shape: f32[544,16], index: 3, kind: input, shape index: {}]
  %s4 = inlined_call_operand.vmem [shape: f32[17,16], index: 4, kind: input, shape index: {}]
  %s5 = inlined_call_operand.vmem [shape: f32[544,17], index: 5, kind: input, shape index: {}]
  %s6 = inlined_call_operand.vmem [shape: s32[1,544], index: 6, kind: input, shape index: {}]
  %s7 = inlined_call_operand.hbm [shape: f32[16,16], index: 7, kind: output, shape index: {}]
  %s8 = sld [smem:[#allocation0]]
  $region38: #{tpu_custom_call.1} parent=0
    _
  %s10 = ssub.s32 1, %s8
  %s11 = scalar_select 0, %s10, %s8
  $region1: #{tpu_custom_call.1} parent=0
    #allocation2 [shape = 'u8[8192]{0}', space=vmem, size = 0x2000, scoped, tag = 'output window, operand 0, single buffered']
    #allocation3 [shape = 's32[1]{0}', space=sflag, size = 0x4, scoped, tag = 'scoped memory for tpu_custom_call.1']
    %12 = vsyncpa [#allocation3], 0
    // Predicated region
    $region2: #{tpu_custom_call.1} parent=1 // pred_check
      _
    $region3: #{tpu_custom_call.1} parent=1 // pred_check_branch
      %14 = sbr.rel (0) target = $region5
    $region4: #{tpu_custom_call.1} parent=1 // pred_region
      _
    $region5: #{tpu_custom_call.1} parent=1 // pred_fallthru
      _
    // Predicated region
    $region6: #{tpu_custom_call.1} parent=1 // pred_check
      _
    $region7: #{tpu_custom_call.1} parent=1 // pred_check_branch
      %16 = sbr.rel (0) target = $region9
    $region8: #{tpu_custom_call.1} parent=1 // pred_region
      _
    $region9: #{tpu_custom_call.1} parent=1 // pred_fallthru
      _
    // Predicated region
    $region10: #{tpu_custom_call.1} parent=1 // pred_check
      _
    $region11: #{tpu_custom_call.1} parent=1 // pred_check_branch
      %18 = sbr.rel (0) target = $region13
    $region12: #{tpu_custom_call.1} parent=1 // pred_region
      _
    $region13: #{tpu_custom_call.1} parent=1 // pred_fallthru
      _
    // Predicated region
    $region14: #{tpu_custom_call.1} parent=1 // pred_check
      _
    $region15: #{tpu_custom_call.1} parent=1 // pred_check_branch
      %20 = sbr.rel (0) target = $region17
    $region16: #{tpu_custom_call.1} parent=1 // pred_region
      _
    $region17: #{tpu_custom_call.1} parent=1 // pred_fallthru
      _
    // Predicated region
    $region18: #{tpu_custom_call.1} parent=1 // pred_check
      _
    $region19: #{tpu_custom_call.1} parent=1 // pred_check_branch
      %22 = sbr.rel (0) target = $region21
    $region20: #{tpu_custom_call.1} parent=1 // pred_region
      _
    $region21: #{tpu_custom_call.1} parent=1 // pred_fallthru
      _
    // Predicated region
    $region22: #{tpu_custom_call.1} parent=1 // pred_check
      _
    $region23: #{tpu_custom_call.1} parent=1 // pred_check_branch
      %24 = sbr.rel (0) target = $region25
    $region24: #{tpu_custom_call.1} parent=1 // pred_region
      _
    $region25: #{tpu_custom_call.1} parent=1 // pred_fallthru
      _
    // Predicated region
    $region26: #{tpu_custom_call.1} parent=1 // pred_check
      _
    $region27: #{tpu_custom_call.1} parent=1 // pred_check_branch
      %26 = sbr.rel (0) target = $region29
    $region28: #{tpu_custom_call.1} parent=1 // pred_region
      _
    $region29: #{tpu_custom_call.1} parent=1 // pred_fallthru
      _
    %v27 = vld [vmem:[%s0] sm:$0xff]
    %v28 = vld [vmem:[%s0 + $0x8] sm:$0xff]
    %v29 = vld [vmem:[%s1] sm:$0xff]
    %v30 = vld [vmem:[%s1 + $0x8] sm:$0xff]
    %v31 = vld [vmem:[%s1 + $0x10] sm:$0xff]
    %v32 = vld [vmem:[%s1 + $0x18] sm:$0xff]
    %v33 = vld [vmem:[%s1 + $0x20] sm:$0xff]
    %v34 = vld [vmem:[%s1 + $0x28] sm:$0xff]
    %v35 = vld [vmem:[%s1 + $0x30] sm:$0xff]
    %v36 = vld [vmem:[%s1 + $0x38] sm:$0xff]
    %v37 = vld [vmem:[%s1 + $0x40] sm:$0xff]
    %v38 = vld [vmem:[%s1 + $0x48] sm:$0xff]
    %v39 = vld [vmem:[%s3] sm:$0xff]
    %v40 = vld [vmem:[%s3 + $0x8] sm:$0xff]
    %v41 = vld [vmem:[%s3 + $0x10] sm:$0xff]
    %v42 = vld [vmem:[%s3 + $0x18] sm:$0xff]
    %v43 = vld [vmem:[%s3 + $0x20] sm:$0xff]
    %v44 = vld [vmem:[%s3 + $0x28] sm:$0xff]
    %v45 = vld [vmem:[%s3 + $0x30] sm:$0xff]
    %v46 = vld [vmem:[%s3 + $0x38] sm:$0xff]
    %v47 = vld [vmem:[%s3 + $0x40] sm:$0xff]
    %v48 = vld [vmem:[%s3 + $0x48] sm:$0xff]
    %v49 = vld [vmem:[%s3 + $0x50] sm:$0xff]
    %v50 = vld [vmem:[%s3 + $0x58] sm:$0xff]
    %v51 = vld [vmem:[%s3 + $0x60] sm:$0xff]
    %v52 = vld [vmem:[%s3 + $0x68] sm:$0xff]
    %v53 = vld [vmem:[%s3 + $0x70] sm:$0xff]
    %v54 = vld [vmem:[%s3 + $0x78] sm:$0xff]
    %v55 = vld [vmem:[%s3 + $0x80] sm:$0xff]
    %v56 = vld [vmem:[%s3 + $0x88] sm:$0xff]
    %v57 = vld [vmem:[%s3 + $0x90] sm:$0xff]
    %v58 = vld [vmem:[%s3 + $0x98] sm:$0xff]
    %v59 = vld [vmem:[%s3 + $0xa0] sm:$0xff]
    %v60 = vld [vmem:[%s3 + $0xa8] sm:$0xff]
    %v61 = vld [vmem:[%s3 + $0xb0] sm:$0xff]
    %v62 = vld [vmem:[%s3 + $0xb8] sm:$0xff]
    %v63 = vld [vmem:[%s3 + $0xc0] sm:$0xff]
    %v64 = vld [vmem:[%s3 + $0xc8] sm:$0xff]
    %v65 = vld [vmem:[%s3 + $0xd0] sm:$0xff]
    %v66 = vld [vmem:[%s3 + $0xd8] sm:$0xff]
    %v67 = vld [vmem:[%s3 + $0xe0] sm:$0xff]
    %v68 = vld [vmem:[%s3 + $0xe8] sm:$0xff]
    %v69 = vld [vmem:[%s3 + $0xf0] sm:$0xff]
    %v70 = vld [vmem:[%s3 + $0xf8] sm:$0xff]
    %v71 = vld [vmem:[%s3 + $0x100] sm:$0xff]
    %v72 = vld [vmem:[%s3 + $0x108] sm:$0xff]
    %v73 = vld [vmem:[%s3 + $0x110] sm:$0xff]
    %v74 = vld [vmem:[%s3 + $0x118] sm:$0xff]
    %v75 = vld [vmem:[%s3 + $0x120] sm:$0xff]
    %v76 = vld [vmem:[%s3 + $0x128] sm:$0xff]
    %v77 = vld [vmem:[%s3 + $0x130] sm:$0xff]
    %v78 = vld [vmem:[%s3 + $0x138] sm:$0xff]
    %v79 = vld [vmem:[%s3 + $0x140] sm:$0xff]
    %v80 = vld [vmem:[%s3 + $0x148] sm:$0xff]
    %v81 = vld [vmem:[%s3 + $0x150] sm:$0xff]
    %v82 = vld [vmem:[%s3 + $0x158] sm:$0xff]
    %v83 = vld [vmem:[%s3 + $0x160] sm:$0xff]
    %v84 = vld [vmem:[%s3 + $0x168] sm:$0xff]
    %v85 = vld [vmem:[%s3 + $0x170] sm:$0xff]
    %v86 = vld [vmem:[%s3 + $0x178] sm:$0xff]
    %v87 = vld [vmem:[%s3 + $0x180] sm:$0xff]
    %v88 = vld [vmem:[%s3 + $0x188] sm:$0xff]
    %v89 = vld [vmem:[%s3 + $0x190] sm:$0xff]
    %v90 = vld [vmem:[%s3 + $0x198] sm:$0xff]
    %v91 = vld [vmem:[%s3 + $0x1a0] sm:$0xff]
    %v92 = vld [vmem:[%s3 + $0x1a8] sm:$0xff]
    %v93 = vld [vmem:[%s3 + $0x1b0] sm:$0xff]
    %v94 = vld [vmem:[%s3 + $0x1b8] sm:$0xff]
    %v95 = vld [vmem:[%s3 + $0x1c0] sm:$0xff]
    %v96 = vld [vmem:[%s3 + $0x1c8] sm:$0xff]
    %v97 = vld [vmem:[%s3 + $0x1d0] sm:$0xff]
    %v98 = vld [vmem:[%s3 + $0x1d8] sm:$0xff]
    %v99 = vld [vmem:[%s3 + $0x1e0] sm:$0xff]
    %v100 = vld [vmem:[%s3 + $0x1e8] sm:$0xff]
    %v101 = vld [vmem:[%s3 + $0x1f0] sm:$0xff]
    %v102 = vld [vmem:[%s3 + $0x1f8] sm:$0xff]
    %v103 = vld [vmem:[%s3 + $0x200] sm:$0xff]
    %v104 = vld [vmem:[%s3 + $0x208] sm:$0xff]
    %v105 = vld [vmem:[%s3 + $0x210] sm:$0xff]
    %v106 = vld [vmem:[%s3 + $0x218] sm:$0xff]
    %v107 = vld [vmem:[%s2] sm:$0x1f]
    %v109 = vlaneseq
    %v110 = vshrl.u32 %v109, 7
    %v111 = vsub.s32 0, %v110
    %v112 = vrot.slane %v107, %v111
    %v113 = vlaneseq
    %v114 = vshrl.u32 %v113, 7
    %v115 = vsub.s32 1, %v114
    %v116 = vrot.slane %v107, %v115
    %v117 = vlaneseq
    %v118 = vshrl.u32 %v117, 7
    %v119 = vsub.s32 2, %v118
    %v120 = vrot.slane %v107, %v119
    %v121 = vlaneseq
    %v122 = vshrl.u32 %v121, 7
    %v123 = vsub.s32 3, %v122
    %v124 = vrot.slane %v107, %v123
    %v125 = vlaneseq
    %v126 = vshrl.u32 %v125, 7
    %v127 = vsub.s32 4, %v126
    %v128 = vrot.slane %v107, %v127
    %vm134 = vcmask 130048
    %v136 = vsel %vm134, %v27, 0
    %v139 = vsel %vm134, %v28, 0
    %141 = vmatprep.subr.mxu0 %v30
    %142 = vmatpush1.msra.mxu0 %v29
    %143 = vmatprep.subr.mxu0 %v35
    %144 = vmatpush1.msra.mxu0 %v34
    %145 = vmatprep.subr.mxu0 0.0
    %146 = vmatpush1.msra.mxu0 0.0
    %147 = vmatprep.subr.mxu0 0.0
    %148 = vmatpush1.msra.mxu0 0.0
    %149 = vmatprep.subr.mxu0 0.0
    %150 = vmatpush1.msra.mxu0 0.0
    %151 = vmatprep.subr.mxu0 0.0
    %152 = vmatpush1.msra.mxu0 0.0
    %153 = vmatprep.subr.mxu0 0.0
    %154 = vmatpush1.msra.mxu0 0.0
    %155 = vmatprep.subr.mxu0 0.0
    %156 = vmatpush1.msra.mxu0 0.0
    %157 = vmatprep.subr.mxu0 0.0
    %158 = vmatpush1.msra.mxu0 0.0
    %159 = vmatprep.subr.mxu0 0.0
    %160 = vmatpush1.msra.mxu0 0.0
    %161 = vmatprep.subr.mxu0 0.0
    %162 = vmatpush1.msra.mxu0 0.0
    %163 = vmatprep.subr.mxu0 0.0
    %164 = vmatpush1.msra.mxu0 0.0
    %165 = vmatprep.subr.mxu0 0.0
    %166 = vmatpush1.msra.mxu0 0.0
    %167 = vmatprep.subr.mxu0 0.0
    %168 = vmatpush1.msra.mxu0 0.0
    %169 = vmatprep.subr.mxu0 0.0
    %170 = vmatpush1.msra.mxu0 0.0
    %171 = vmatprep.subr.mxu0 0.0
    %172 = vmatpush1.msra.mxu0 0.0
    %173 = vmatprep.subr.mxu0 0.0
    %174 = vmatpush1.msra.mxu0 0.0
    %175 = vmatprep.subr.mxu0 0.0
    %176 = vmatpush1.msra.mxu0 0.0
    %177 = vmatprep.subr.mxu0 0.0
    %178 = vmatpush1.msra.mxu0 0.0
    %179 = vmatprep.subr.mxu0 0.0
    %180 = vmatpush1.msra.mxu0 0.0
    %181 = vmatprep.subr.mxu0 0.0
    %182 = vmatpush1.msra.mxu0 0.0
    %183 = vmatprep.subr.mxu0 0.0
    %184 = vmatpush1.msra.mxu0 0.0
    %185 = vmatprep.subr.mxu0 0.0
    %186 = vmatpush1.msra.mxu0 0.0
    %187 = vmatprep.subr.mxu0 0.0
    %188 = vmatpush1.msra.mxu0 0.0
    %189 = vmatprep.subr.mxu0 0.0
    %190 = vmatpush1.msra.mxu0 0.0
    %191 = vmatprep.subr.mxu0 0.0
    %192 = vmatpush1.msra.mxu0 0.0
    %193 = vmatprep.subr.mxu0 0.0
    %194 = vmatpush1.msra.mxu0 0.0
    %195 = vmatprep.subr.mxu0 0.0
    %196 = vmatpush1.msra.mxu0 0.0
    %197 = vmatprep.subr.mxu0 0.0
    %198 = vmatpush1.msra.mxu0 0.0
    %199 = vmatprep.subr.mxu0 0.0
    %200 = vmatpush1.msra.mxu0 0.0
    %201 = vmatprep.subr.mxu0 0.0
    %202 = vmatpush1.msra.mxu0 0.0
    %203 = vmatprep.subr.mxu0 0.0
    %204 = vmatpush1.msra.mxu0 0.0
    %205 = vmatprep.mubr.f32.mxu0 0.0
    %206 = vmatmul.mubr.f32.gmra.mrb[0].mxu0 %v136
    %v207 = vpop.f32.mrb[0].mxu0
    %v208 = vadd.f32 %v112, %v207
    %v209 = vpop.f32.mrb[0].mxu0
    %v210 = vadd.f32 %v116, %v209
    %211 = vmatprep.mubr.f32.mxu0 0.0
    %212 = vmatmul.mubr.f32.gmra.mrb[0].mxu0 %v139
    %v213 = vpop.f32.mrb[0].mxu0
    %v214 = vadd.f32 %v112, %v213
    %v215 = vpop.f32.mrb[0].mxu0
    %v216 = vadd.f32 %v116, %v215
    %217 = vdwg.mxu0
    %218 = vmatprep.subr.mxu0 %v32
    %219 = vmatpush1.msra.mxu0 %v31
    %220 = vmatprep.subr.mxu0 %v37
    %221 = vmatpush1.msra.mxu0 %v36
    %222 = vmatprep.subr.mxu0 0.0
    %223 = vmatpush1.msra.mxu0 0.0
    %224 = vmatprep.subr.mxu0 0.0
    %225 = vmatpush1.msra.mxu0 0.0
    %226 = vmatprep.subr.mxu0 0.0
    %227 = vmatpush1.msra.mxu0 0.0
    %228 = vmatprep.subr.mxu0 0.0
    %229 = vmatpush1.msra.mxu0 0.0
    %230 = vmatprep.subr.mxu0 0.0
    %231 = vmatpush1.msra.mxu0 0.0
    %232 = vmatprep.subr.mxu0 0.0
    %233 = vmatpush1.msra.mxu0 0.0
    %234 = vmatprep.subr.mxu0 0.0
    %235 = vmatpush1.msra.mxu0 0.0
    %236 = vmatprep.subr.mxu0 0.0
    %237 = vmatpush1.msra.mxu0 0.0
    %238 = vmatprep.subr.mxu0 0.0
    %239 = vmatpush1.msra.mxu0 0.0
    %240 = vmatprep.subr.mxu0 0.0
    %241 = vmatpush1.msra.mxu0 0.0
    %242 = vmatprep.subr.mxu0 0.0
    %243 = vmatpush1.msra.mxu0 0.0
    %244 = vmatprep.subr.mxu0 0.0
    %245 = vmatpush1.msra.mxu0 0.0
    %246 = vmatprep.subr.mxu0 0.0
    %247 = vmatpush1.msra.mxu0 0.0
    %248 = vmatprep.subr.mxu0 0.0
    %249 = vmatpush1.msra.mxu0 0.0
    %250 = vmatprep.subr.mxu0 0.0
    %251 = vmatpush1.msra.mxu0 0.0
    %252 = vmatprep.subr.mxu0 0.0
    %253 = vmatpush1.msra.mxu0 0.0
    %254 = vmatprep.subr.mxu0 0.0
    %255 = vmatpush1.msra.mxu0 0.0
    %256 = vmatprep.subr.mxu0 0.0
    %257 = vmatpush1.msra.mxu0 0.0
    %258 = vmatprep.subr.mxu0 0.0
    %259 = vmatpush1.msra.mxu0 0.0
    %260 = vmatprep.subr.mxu0 0.0
    %261 = vmatpush1.msra.mxu0 0.0
    %262 = vmatprep.subr.mxu0 0.0
    %263 = vmatpush1.msra.mxu0 0.0
    %264 = vmatprep.subr.mxu0 0.0
    %265 = vmatpush1.msra.mxu0 0.0
    %266 = vmatprep.subr.mxu0 0.0
    %267 = vmatpush1.msra.mxu0 0.0
    %268 = vmatprep.subr.mxu0 0.0
    %269 = vmatpush1.msra.mxu0 0.0
    %270 = vmatprep.subr.mxu0 0.0
    %271 = vmatpush1.msra.mxu0 0.0
    %272 = vmatprep.subr.mxu0 0.0
    %273 = vmatpush1.msra.mxu0 0.0
    %274 = vmatprep.subr.mxu0 0.0
    %275 = vmatpush1.msra.mxu0 0.0
    %276 = vmatprep.subr.mxu0 0.0
    %277 = vmatpush1.msra.mxu0 0.0
    %278 = vmatprep.subr.mxu0 0.0
    %279 = vmatpush1.msra.mxu0 0.0
    %280 = vmatprep.subr.mxu0 0.0
    %281 = vmatpush1.msra.mxu0 0.0
    %282 = vmatprep.mubr.f32.mxu0 0.0
    %283 = vmatmul.mubr.f32.gmra.mrb[0].mxu0 %v136
    %v284 = vpop.f32.mrb[0].mxu0
    %v285 = vadd.f32 %v120, %v284
    %v286 = vpop.f32.mrb[0].mxu0
    %v287 = vadd.f32 %v124, %v286
    %288 = vmatprep.mubr.f32.mxu0 0.0
    %289 = vmatmul.mubr.f32.gmra.mrb[0].mxu0 %v139
    %v290 = vpop.f32.mrb[0].mxu0
    %v291 = vadd.f32 %v120, %v290
    %v292 = vpop.f32.mrb[0].mxu0
    %v293 = vadd.f32 %v124, %v292
    %294 = vdwg.mxu0
    %295 = vmatprep.subr.mxu0 0.0
    %296 = vmatpush1.msra.mxu0 %v33
    %297 = vmatprep.subr.mxu0 0.0
    %298 = vmatpush1.msra.mxu0 %v38
    %299 = vmatprep.subr.mxu0 0.0
    %300 = vmatpush1.msra.mxu0 0.0
    %301 = vmatprep.subr.mxu0 0.0
    %302 = vmatpush1.msra.mxu0 0.0
    %303 = vmatprep.subr.mxu0 0.0
    %304 = vmatpush1.msra.mxu0 0.0
    %305 = vmatprep.subr.mxu0 0.0
    %306 = vmatpush1.msra.mxu0 0.0
    %307 = vmatprep.subr.mxu0 0.0
    %308 = vmatpush1.msra.mxu0 0.0
    %309 = vmatprep.subr.mxu0 0.0
    %310 = vmatpush1.msra.mxu0 0.0
    %311 = vmatprep.subr.mxu0 0.0
    %312 = vmatpush1.msra.mxu0 0.0
    %313 = vmatprep.subr.mxu0 0.0
    %314 = vmatpush1.msra.mxu0 0.0
    %315 = vmatprep.subr.mxu0 0.0
    %316 = vmatpush1.msra.mxu0 0.0
    %317 = vmatprep.subr.mxu0 0.0
    %318 = vmatpush1.msra.mxu0 0.0
    %319 = vmatprep.subr.mxu0 0.0
    %320 = vmatpush1.msra.mxu0 0.0
    %321 = vmatprep.subr.mxu0 0.0
    %322 = vmatpush1.msra.mxu0 0.0
    %323 = vmatprep.subr.mxu0 0.0
    %324 = vmatpush1.msra.mxu0 0.0
    %325 = vmatprep.subr.mxu0 0.0
    %326 = vmatpush1.msra.mxu0 0.0
    %327 = vmatprep.subr.mxu0 0.0
    %328 = vmatpush1.msra.mxu0 0.0
    %329 = vmatprep.subr.mxu0 0.0
    %330 = vmatpush1.msra.mxu0 0.0
    %331 = vmatprep.subr.mxu0 0.0
    %332 = vmatpush1.msra.mxu0 0.0
    %333 = vmatprep.subr.mxu0 0.0
    %334 = vmatpush1.msra.mxu0 0.0
    %335 = vmatprep.subr.mxu0 0.0
    %336 = vmatpush1.msra.mxu0 0.0
    %337 = vmatprep.subr.mxu0 0.0
    %338 = vmatpush1.msra.mxu0 0.0
    %339 = vmatprep.subr.mxu0 0.0
    %340 = vmatpush1.msra.mxu0 0.0
    %341 = vmatprep.subr.mxu0 0.0
    %342 = vmatpush1.msra.mxu0 0.0
    %343 = vmatprep.subr.mxu0 0.0
    %344 = vmatpush1.msra.mxu0 0.0
    %345 = vmatprep.subr.mxu0 0.0
    %346 = vmatpush1.msra.mxu0 0.0
    %347 = vmatprep.subr.mxu0 0.0
    %348 = vmatpush1.msra.mxu0 0.0
    %349 = vmatprep.subr.mxu0 0.0
    %350 = vmatpush1.msra.mxu0 0.0
    %351 = vmatprep.subr.mxu0 0.0
    %352 = vmatpush1.msra.mxu0 0.0
    %353 = vmatprep.subr.mxu0 0.0
    %354 = vmatpush1.msra.mxu0 0.0
    %355 = vmatprep.subr.mxu0 0.0
    %356 = vmatpush1.msra.mxu0 0.0
    %357 = vmatprep.subr.mxu0 0.0
    %358 = vmatpush1.msra.mxu0 0.0
    %359 = vmatprep.mubr.f32.mxu0 0.0
    %360 = vmatmul.mubr.f32.gmra.mrb[0].mxu0 %v136
    %v361 = vpop.f32.mrb[0].mxu0
    %v362 = vadd.f32 %v128, %v361
    %v363 = vpop.f32.mrb[0].mxu0
    %364 = vmatprep.mubr.f32.mxu0 0.0
    %365 = vmatmul.mubr.f32.gmra.mrb[0].mxu0 %v139
    %v366 = vpop.f32.mrb[0].mxu0
    %v367 = vadd.f32 %v128, %v366
    %v368 = vpop.f32.mrb[0].mxu0
    %369 = vdwg.mxu0
    %v370 = vmul.f32 %v208, %v208
    %v371 = vmul.f32 %v210, %v210
    %v372 = vmul.f32 %v285, %v285
    %v373 = vmul.f32 %v287, %v287
    %v374 = vmul.f32 %v362, %v362
    %v375 = vmul.f32 %v214, %v214
    %v376 = vmul.f32 %v216, %v216
    %v377 = vmul.f32 %v291, %v291
    %v378 = vmul.f32 %v293, %v293
    %v379 = vmul.f32 %v367, %v367
    %v380 = vld [vmem:[%s5] sm:$0xff]
    %v381 = vld [vmem:[%s5 + $0x8] sm:$0xff]
    %v382 = vld [vmem:[%s5 + $0x10] sm:$0xff]
    %v383 = vld [vmem:[%s5 + $0x18] sm:$0xff]
    %v384 = vld [vmem:[%s5 + $0x20] sm:$0xff]
    %v385 = vld [vmem:[%s5 + $0x28] sm:$0xff]
    %v386 = vld [vmem:[%s5 + $0x30] sm:$0xff]
    %v387 = vld [vmem:[%s5 + $0x38] sm:$0xff]
    %v388 = vld [vmem:[%s5 + $0x40] sm:$0xff]
    %v389 = vld [vmem:[%s5 + $0x48] sm:$0xff]
    %v390 = vld [vmem:[%s5 + $0x50] sm:$0xff]
    %v391 = vld [vmem:[%s5 + $0x58] sm:$0xff]
    %v392 = vld [vmem:[%s5 + $0x60] sm:$0xff]
    %v393 = vld [vmem:[%s5 + $0x68] sm:$0xff]
    %v394 = vld [vmem:[%s5 + $0x70] sm:$0xff]
    %v395 = vld [vmem:[%s5 + $0x78] sm:$0xff]
    %v396 = vld [vmem:[%s5 + $0x80] sm:$0xff]
    %v397 = vld [vmem:[%s5 + $0x88] sm:$0xff]
    %v398 = vld [vmem:[%s5 + $0x90] sm:$0xff]
    %v399 = vld [vmem:[%s5 + $0x98] sm:$0xff]
    %v400 = vld [vmem:[%s5 + $0xa0] sm:$0xff]
    %v401 = vld [vmem:[%s5 + $0xa8] sm:$0xff]
    %v402 = vld [vmem:[%s5 + $0xb0] sm:$0xff]
    %v403 = vld [vmem:[%s5 + $0xb8] sm:$0xff]
    %v404 = vld [vmem:[%s5 + $0xc0] sm:$0xff]
    %v405 = vld [vmem:[%s5 + $0xc8] sm:$0xff]
    %v406 = vld [vmem:[%s5 + $0xd0] sm:$0xff]
    %v407 = vld [vmem:[%s5 + $0xd8] sm:$0xff]
    %v408 = vld [vmem:[%s5 + $0xe0] sm:$0xff]
    %v409 = vld [vmem:[%s5 + $0xe8] sm:$0xff]
    %v410 = vld [vmem:[%s5 + $0xf0] sm:$0xff]
    %v411 = vld [vmem:[%s5 + $0xf8] sm:$0xff]
    %v412 = vld [vmem:[%s5 + $0x100] sm:$0xff]
    %v413 = vld [vmem:[%s5 + $0x108] sm:$0xff]
    %v414 = vld [vmem:[%s5 + $0x110] sm:$0xff]
    %v415 = vld [vmem:[%s5 + $0x118] sm:$0xff]
    %v416 = vld [vmem:[%s5 + $0x120] sm:$0xff]
    %v417 = vld [vmem:[%s5 + $0x128] sm:$0xff]
    %v418 = vld [vmem:[%s5 + $0x130] sm:$0xff]
    %v419 = vld [vmem:[%s5 + $0x138] sm:$0xff]
    %v420 = vld [vmem:[%s5 + $0x140] sm:$0xff]
    %v421 = vld [vmem:[%s5 + $0x148] sm:$0xff]
    %v422 = vld [vmem:[%s5 + $0x150] sm:$0xff]
    %v423 = vld [vmem:[%s5 + $0x158] sm:$0xff]
    %v424 = vld [vmem:[%s5 + $0x160] sm:$0xff]
    %v425 = vld [vmem:[%s5 + $0x168] sm:$0xff]
    %v426 = vld [vmem:[%s5 + $0x170] sm:$0xff]
    %v427 = vld [vmem:[%s5 + $0x178] sm:$0xff]
    %v428 = vld [vmem:[%s5 + $0x180] sm:$0xff]
    %v429 = vld [vmem:[%s5 + $0x188] sm:$0xff]
    %v430 = vld [vmem:[%s5 + $0x190] sm:$0xff]
    %v431 = vld [vmem:[%s5 + $0x198] sm:$0xff]
    %v432 = vld [vmem:[%s5 + $0x1a0] sm:$0xff]
    %v433 = vld [vmem:[%s5 + $0x1a8] sm:$0xff]
    %v434 = vld [vmem:[%s5 + $0x1b0] sm:$0xff]
    %v435 = vld [vmem:[%s5 + $0x1b8] sm:$0xff]
    %v436 = vld [vmem:[%s5 + $0x1c0] sm:$0xff]
    %v437 = vld [vmem:[%s5 + $0x1c8] sm:$0xff]
    %v438 = vld [vmem:[%s5 + $0x1d0] sm:$0xff]
    %v439 = vld [vmem:[%s5 + $0x1d8] sm:$0xff]
    %v440 = vld [vmem:[%s5 + $0x1e0] sm:$0xff]
    %v441 = vld [vmem:[%s5 + $0x1e8] sm:$0xff]
    %v442 = vld [vmem:[%s5 + $0x1f0] sm:$0xff]
    %v443 = vld [vmem:[%s5 + $0x1f8] sm:$0xff]
    %v444 = vld [vmem:[%s5 + $0x200] sm:$0xff]
    %v445 = vld [vmem:[%s5 + $0x208] sm:$0xff]
    %v446 = vld [vmem:[%s5 + $0x210] sm:$0xff]
    %v447 = vld [vmem:[%s5 + $0x218] sm:$0xff]
    %vm448 = vcmask 261120
    %v450 = vsel %vm448, %v374, 0
    %v453 = vsel %vm448, %v379, 0
    %455 = vmatprep.subr.mxu0 0.0
    %456 = vmatpush1.msra.mxu0 %v380
    %457 = vmatprep.subr.mxu0 0.0
    %458 = vmatpush1.msra.mxu0 %v381
    %459 = vmatprep.subr.mxu0 0.0
    %460 = vmatpush1.msra.mxu0 %v382
    %461 = vmatprep.subr.mxu0 0.0
    %462 = vmatpush1.msra.mxu0 %v383
    %463 = vmatprep.subr.mxu0 0.0
    %464 = vmatpush1.msra.mxu0 %v384
    %465 = vmatprep.subr.mxu0 0.0
    %466 = vmatpush1.msra.mxu0 %v385
    %467 = vmatprep.subr.mxu0 0.0
    %468 = vmatpush1.msra.mxu0 %v386
    %469 = vmatprep.subr.mxu0 0.0
    %470 = vmatpush1.msra.mxu0 %v387
    %471 = vmatprep.subr.mxu0 0.0
    %472 = vmatpush1.msra.mxu0 %v388
    %473 = vmatprep.subr.mxu0 0.0
    %474 = vmatpush1.msra.mxu0 %v389
    %475 = vmatprep.subr.mxu0 0.0
    %476 = vmatpush1.msra.mxu0 %v390
    %477 = vmatprep.subr.mxu0 0.0
    %478 = vmatpush1.msra.mxu0 %v391
    %479 = vmatprep.subr.mxu0 0.0
    %480 = vmatpush1.msra.mxu0 %v392
    %481 = vmatprep.subr.mxu0 0.0
    %482 = vmatpush1.msra.mxu0 %v393
    %483 = vmatprep.subr.mxu0 0.0
    %484 = vmatpush1.msra.mxu0 %v394
    %485 = vmatprep.subr.mxu0 0.0
    %486 = vmatpush1.msra.mxu0 %v395
    %487 = vmatprep.subr.mxu0 0.0
    %488 = vmatpush1.msra.mxu0 %v396
    %489 = vmatprep.subr.mxu0 0.0
    %490 = vmatpush1.msra.mxu0 %v397
    %491 = vmatprep.subr.mxu0 0.0
    %492 = vmatpush1.msra.mxu0 %v398
    %493 = vmatprep.subr.mxu0 0.0
    %494 = vmatpush1.msra.mxu0 %v399
    %495 = vmatprep.subr.mxu0 0.0
    %496 = vmatpush1.msra.mxu0 %v400
    %497 = vmatprep.subr.mxu0 0.0
    %498 = vmatpush1.msra.mxu0 %v401
    %499 = vmatprep.subr.mxu0 0.0
    %500 = vmatpush1.msra.mxu0 %v402
    %501 = vmatprep.subr.mxu0 0.0
    %502 = vmatpush1.msra.mxu0 %v403
    %503 = vmatprep.subr.mxu0 0.0
    %504 = vmatpush1.msra.mxu0 %v404
    %505 = vmatprep.subr.mxu0 0.0
    %506 = vmatpush1.msra.mxu0 %v405
    %507 = vmatprep.subr.mxu0 0.0
    %508 = vmatpush1.msra.mxu0 %v406
    %509 = vmatprep.subr.mxu0 0.0
    %510 = vmatpush1.msra.mxu0 %v407
    %511 = vmatprep.subr.mxu0 0.0
    %512 = vmatpush1.msra.mxu0 %v408
    %513 = vmatprep.subr.mxu0 0.0
    %514 = vmatpush1.msra.mxu0 %v409
    %515 = vmatprep.subr.mxu0 0.0
    %516 = vmatpush1.msra.mxu0 %v410
    %517 = vmatprep.subr.mxu0 0.0
    %518 = vmatpush1.msra.mxu0 %v411
    %519 = vmatprep.mubr.f32.mxu0 %v371
    %520 = vmatmul.mubr.f32.gmra.mrb[0].mxu0 %v370
    %v521 = vpop.f32.mrb[0].mxu0
    %v522 = vadd.f32 0.0, %v521
    %v523 = vpop.f32.mrb[0].mxu0
    %524 = vmatprep.mubr.f32.mxu0 %v376
    %525 = vmatmul.mubr.f32.gmra.mrb[0].mxu0 %v375
    %v526 = vpop.f32.mrb[0].mxu0
    %v527 = vadd.f32 0.0, %v526
    %v528 = vpop.f32.mrb[0].mxu0
    %529 = vdwg.mxu0
    %530 = vmatprep.subr.mxu0 0.0
    %531 = vmatpush1.msra.mxu0 %v412
    %532 = vmatprep.subr.mxu0 0.0
    %533 = vmatpush1.msra.mxu0 %v413
    %534 = vmatprep.subr.mxu0 0.0
    %535 = vmatpush1.msra.mxu0 %v414
    %536 = vmatprep.subr.mxu0 0.0
    %537 = vmatpush1.msra.mxu0 %v415
    %538 = vmatprep.subr.mxu0 0.0
    %539 = vmatpush1.msra.mxu0 %v416
    %540 = vmatprep.subr.mxu0 0.0
    %541 = vmatpush1.msra.mxu0 %v417
    %542 = vmatprep.subr.mxu0 0.0
    %543 = vmatpush1.msra.mxu0 %v418
    %544 = vmatprep.subr.mxu0 0.0
    %545 = vmatpush1.msra.mxu0 %v419
    %546 = vmatprep.subr.mxu0 0.0
    %547 = vmatpush1.msra.mxu0 %v420
    %548 = vmatprep.subr.mxu0 0.0
    %549 = vmatpush1.msra.mxu0 %v421
    %550 = vmatprep.subr.mxu0 0.0
    %551 = vmatpush1.msra.mxu0 %v422
    %552 = vmatprep.subr.mxu0 0.0
    %553 = vmatpush1.msra.mxu0 %v423
    %554 = vmatprep.subr.mxu0 0.0
    %555 = vmatpush1.msra.mxu0 %v424
    %556 = vmatprep.subr.mxu0 0.0
    %557 = vmatpush1.msra.mxu0 %v425
    %558 = vmatprep.subr.mxu0 0.0
    %559 = vmatpush1.msra.mxu0 %v426
    %560 = vmatprep.subr.mxu0 0.0
    %561 = vmatpush1.msra.mxu0 %v427
    %562 = vmatprep.subr.mxu0 0.0
    %563 = vmatpush1.msra.mxu0 %v428
    %564 = vmatprep.subr.mxu0 0.0
    %565 = vmatpush1.msra.mxu0 %v429
    %566 = vmatprep.subr.mxu0 0.0
    %567 = vmatpush1.msra.mxu0 %v430
    %568 = vmatprep.subr.mxu0 0.0
    %569 = vmatpush1.msra.mxu0 %v431
    %570 = vmatprep.subr.mxu0 0.0
    %571 = vmatpush1.msra.mxu0 %v432
    %572 = vmatprep.subr.mxu0 0.0
    %573 = vmatpush1.msra.mxu0 %v433
    %574 = vmatprep.subr.mxu0 0.0
    %575 = vmatpush1.msra.mxu0 %v434
    %576 = vmatprep.subr.mxu0 0.0
    %577 = vmatpush1.msra.mxu0 %v435
    %578 = vmatprep.subr.mxu0 0.0
    %579 = vmatpush1.msra.mxu0 %v436
    %580 = vmatprep.subr.mxu0 0.0
    %581 = vmatpush1.msra.mxu0 %v437
    %582 = vmatprep.subr.mxu0 0.0
    %583 = vmatpush1.msra.mxu0 %v438
    %584 = vmatprep.subr.mxu0 0.0
    %585 = vmatpush1.msra.mxu0 %v439
    %586 = vmatprep.subr.mxu0 0.0
    %587 = vmatpush1.msra.mxu0 %v440
    %588 = vmatprep.subr.mxu0 0.0
    %589 = vmatpush1.msra.mxu0 %v441
    %590 = vmatprep.subr.mxu0 0.0
    %591 = vmatpush1.msra.mxu0 %v442
    %592 = vmatprep.subr.mxu0 0.0
    %593 = vmatpush1.msra.mxu0 %v443
    %594 = vmatprep.mubr.f32.mxu0 %v373
    %595 = vmatmul.mubr.f32.gmra.mrb[0].mxu0 %v372
    %v596 = vpop.f32.mrb[0].mxu0
    %v597 = vadd.f32 %v522, %v596
    %v598 = vpop.f32.mrb[0].mxu0
    %599 = vmatprep.mubr.f32.mxu0 %v378
    %600 = vmatmul.mubr.f32.gmra.mrb[0].mxu0 %v377
    %v601 = vpop.f32.mrb[0].mxu0
    %v602 = vadd.f32 %v527, %v601
    %v603 = vpop.f32.mrb[0].mxu0
    %604 = vdwg.mxu0
    %605 = vmatprep.subr.mxu0 0.0
    %606 = vmatpush1.msra.mxu0 %v444
    %607 = vmatprep.subr.mxu0 0.0
    %608 = vmatpush1.msra.mxu0 %v445
    %609 = vmatprep.subr.mxu0 0.0
    %610 = vmatpush1.msra.mxu0 %v446
    %611 = vmatprep.subr.mxu0 0.0
    %612 = vmatpush1.msra.mxu0 %v447
    %613 = vmatprep.subr.mxu0 0.0
    %614 = vmatpush1.msra.mxu0 0.0
    %615 = vmatprep.subr.mxu0 0.0
    %616 = vmatpush1.msra.mxu0 0.0
    %617 = vmatprep.subr.mxu0 0.0
    %618 = vmatpush1.msra.mxu0 0.0
    %619 = vmatprep.subr.mxu0 0.0
    %620 = vmatpush1.msra.mxu0 0.0
    %621 = vmatprep.subr.mxu0 0.0
    %622 = vmatpush1.msra.mxu0 0.0
    %623 = vmatprep.subr.mxu0 0.0
    %624 = vmatpush1.msra.mxu0 0.0
    %625 = vmatprep.subr.mxu0 0.0
    %626 = vmatpush1.msra.mxu0 0.0
    %627 = vmatprep.subr.mxu0 0.0
    %628 = vmatpush1.msra.mxu0 0.0
    %629 = vmatprep.subr.mxu0 0.0
    %630 = vmatpush1.msra.mxu0 0.0
    %631 = vmatprep.subr.mxu0 0.0
    %632 = vmatpush1.msra.mxu0 0.0
    %633 = vmatprep.subr.mxu0 0.0
    %634 = vmatpush1.msra.mxu0 0.0
    %635 = vmatprep.subr.mxu0 0.0
    %636 = vmatpush1.msra.mxu0 0.0
    %637 = vmatprep.subr.mxu0 0.0
    %638 = vmatpush1.msra.mxu0 0.0
    %639 = vmatprep.subr.mxu0 0.0
    %640 = vmatpush1.msra.mxu0 0.0
    %641 = vmatprep.subr.mxu0 0.0
    %642 = vmatpush1.msra.mxu0 0.0
    %643 = vmatprep.subr.mxu0 0.0
    %644 = vmatpush1.msra.mxu0 0.0
    %645 = vmatprep.subr.mxu0 0.0
    %646 = vmatpush1.msra.mxu0 0.0
    %647 = vmatprep.subr.mxu0 0.0
    %648 = vmatpush1.msra.mxu0 0.0
    %649 = vmatprep.subr.mxu0 0.0
    %650 = vmatpush1.msra.mxu0 0.0
    %651 = vmatprep.subr.mxu0 0.0
    %652 = vmatpush1.msra.mxu0 0.0
    %653 = vmatprep.subr.mxu0 0.0
    %654 = vmatpush1.msra.mxu0 0.0
    %655 = vmatprep.subr.mxu0 0.0
    %656 = vmatpush1.msra.mxu0 0.0
    %657 = vmatprep.subr.mxu0 0.0
    %658 = vmatpush1.msra.mxu0 0.0
    %659 = vmatprep.subr.mxu0 0.0
    %660 = vmatpush1.msra.mxu0 0.0
    %661 = vmatprep.subr.mxu0 0.0
    %662 = vmatpush1.msra.mxu0 0.0
    %663 = vmatprep.subr.mxu0 0.0
    %664 = vmatpush1.msra.mxu0 0.0
    %665 = vmatprep.subr.mxu0 0.0
    %666 = vmatpush1.msra.mxu0 0.0
    %667 = vmatprep.subr.mxu0 0.0
    %668 = vmatpush1.msra.mxu0 0.0
    %669 = vmatprep.mubr.f32.mxu0 0.0
    %670 = vmatmul.mubr.f32.gmra.mrb[0].mxu0 %v450
    %v671 = vpop.f32.mrb[0].mxu0
    %v672 = vadd.f32 %v597, %v671
    %v673 = vpop.f32.mrb[0].mxu0
    %674 = vmatprep.mubr.f32.mxu0 0.0
    %675 = vmatmul.mubr.f32.gmra.mrb[0].mxu0 %v453
    %v676 = vpop.f32.mrb[0].mxu0
    %v677 = vadd.f32 %v602, %v676
    %v678 = vpop.f32.mrb[0].mxu0
    %679 = vdwg.mxu0
    %vm680 = vcmask 138240
    %v681 = vsel %vm680, %v672, -inf
    %682 = vmax.xlane.f32.xlu0 %v681
    %v683 = vpop.xlane.xlu0 %682
    %v684 = vsel %vm680, %v677, -inf
    %685 = vmax.xlane.f32.xlu0 %v684
    %v686 = vpop.xlane.xlu0 %685
    %v687 = vlaneseq
    %v688 = vand.u32 %v687, 127
    %vm689 = vcmp.eq.f32.partialorder %v672, %v683
    %vm690 = vcmp.eq.f32.partialorder %v677, %v686
    %v691 = vsel %vm689, %v688, 17
    %v692 = vsel %vm690, %v688, 17
    %v693 = vsel %vm680, %v691, 2147483647
    %v694 = vand.u32 %v693, 65535
    %v695 = vshra.s32 %v693, 16
    %v696 = vcvt.s32.f32 %v694
    %v697 = vcvt.s32.f32 %v695
    %698 = vmin.xlane.f32.xlu0 %v697
    %v699 = vpop.xlane.xlu0 %698
    %vm700 = vcmp.eq.f32.partialorder %v697, %v699
    %v701 = vsel %vm700, %v696, inf
    %702 = vmin.xlane.f32.xlu0 %v701
    %v703 = vpop.xlane.xlu0 %702
    %v704 = vcvt.f32.s32 %v703
    %v705 = vcvt.f32.s32 %v699
    %v706 = vshll.u32 %v705, 16
    %v707 = vadd.s32 %v706, %v704
    %v708 = vsel %vm680, %v692, 2147483647
    %v709 = vand.u32 %v708, 65535
    %v710 = vshra.s32 %v708, 16
    %v711 = vcvt.s32.f32 %v709
    %v712 = vcvt.s32.f32 %v710
    %713 = vmin.xlane.f32.xlu0 %v712
    %v714 = vpop.xlane.xlu0 %713
    %vm715 = vcmp.eq.f32.partialorder %v712, %v714
    %v716 = vsel %vm715, %v711, inf
    %717 = vmin.xlane.f32.xlu0 %v716
    %v718 = vpop.xlane.xlu0 %717
    %v719 = vcvt.f32.s32 %v718
    %v720 = vcvt.f32.s32 %v714
    %v721 = vshll.u32 %v720, 16
    %v722 = vadd.s32 %v721, %v719
    %v723 = vld [vmem:[%s6] sm:$0x1f]
    %v724 = vlaneseq
    %v725 = vshrl.u32 %v724, 7
    %v726 = vsub.s32 0, %v725
    %v727 = vrot.slane %v723, %v726
    %v728 = vlaneseq
    %v729 = vshrl.u32 %v728, 7
    %v730 = vsub.s32 1, %v729
    %v731 = vrot.slane %v723, %v730
    %v732 = vlaneseq
    %v733 = vshrl.u32 %v732, 7
    %v734 = vsub.s32 2, %v733
    %v735 = vrot.slane %v723, %v734
    %v736 = vlaneseq
    %v737 = vshrl.u32 %v736, 7
    %v738 = vsub.s32 3, %v737
    %v739 = vrot.slane %v723, %v738
    %v740 = vlaneseq
    %v741 = vshrl.u32 %v740, 7
    %v742 = vsub.s32 4, %v741
    %v743 = vrot.slane %v723, %v742
    %vm744 = vcmp.eq.s32.totalorder %v727, %v707
    %vm745 = vcmp.eq.s32.totalorder %v731, %v707
    %vm746 = vcmp.eq.s32.totalorder %v735, %v707
    %vm747 = vcmp.eq.s32.totalorder %v739, %v707
    %vm748 = vcmp.eq.s32.totalorder %v743, %v707
    %vm749 = vcmp.eq.s32.totalorder %v727, %v722
    %vm750 = vcmp.eq.s32.totalorder %v731, %v722
    %vm751 = vcmp.eq.s32.totalorder %v735, %v722
    %vm752 = vcmp.eq.s32.totalorder %v739, %v722
    %vm753 = vcmp.eq.s32.totalorder %v743, %v722
    %v754 = vsel %vm744, 1, 0
    %v755 = vsel %vm745, 1, 0
    %v756 = vsel %vm746, 1, 0
    %v757 = vsel %vm747, 1, 0
    %v758 = vsel %vm748, 1, 0
    %v759 = vsel %vm749, 1, 0
    %v760 = vsel %vm750, 1, 0
    %v761 = vsel %vm751, 1, 0
    %v762 = vsel %vm752, 1, 0
    %v763 = vsel %vm753, 1, 0
    %v764 = vcvt.s32.f32 %v754
    %v765 = vcvt.s32.f32 %v755
    %v766 = vcvt.s32.f32 %v756
    %v767 = vcvt.s32.f32 %v757
    %v768 = vcvt.s32.f32 %v758
    %v769 = vcvt.s32.f32 %v759
    %v770 = vcvt.s32.f32 %v760
    %v771 = vcvt.s32.f32 %v761
    %v772 = vcvt.s32.f32 %v762
    %v773 = vcvt.s32.f32 %v763
    %vm774 = vcmp.eq.s32.totalorder %v688, %v707
    %vm775 = vcmp.eq.s32.totalorder %v688, %v722
    %v776 = vsel %vm774, 1, 0
    %v777 = vsel %vm775, 1, 0
    %v778 = vcvt.s32.f32 %v776
    %v779 = vcvt.s32.f32 %v777
    %v780 = vmul.f32 %v208, %v764
    %v781 = vmul.f32 %v210, %v765
    %v782 = vmul.f32 %v285, %v766
    %v783 = vmul.f32 %v287, %v767
    %v784 = vmul.f32 %v362, %v768
    %v785 = vmul.f32 %v214, %v769
    %v786 = vmul.f32 %v216, %v770
    %v787 = vmul.f32 %v291, %v771
    %v788 = vmul.f32 %v293, %v772
    %v789 = vmul.f32 %v367, %v773
    %v790 = vld [vmem:[%s4] sm:$0xff]
    %v791 = vld [vmem:[%s4 + $0x8] sm:$0xff]
    %v792 = vld [vmem:[%s4 + $0x10] sm:$0x1]
    %v794 = vsel %vm680, %v778, 0
    %v797 = vsel %vm680, %v779, 0
    %vm799 = vcmask 1040384
    %v801 = vsel %vm799, %v792, 0
    %803 = vmatprep.subr.mxu0 0.0
    %804 = vmatpush1.msra.mxu0 %v790
    %805 = vmatprep.subr.mxu0 0.0
    %806 = vmatpush1.msra.mxu0 %v791
    %807 = vmatprep.subr.mxu0 0.0
    %808 = vmatpush1.msra.mxu0 %v801
    %809 = vmatprep.subr.mxu0 0.0
    %810 = vmatpush1.msra.mxu0 0.0
    %811 = vmatprep.subr.mxu0 0.0
    %812 = vmatpush1.msra.mxu0 0.0
    %813 = vmatprep.subr.mxu0 0.0
    %814 = vmatpush1.msra.mxu0 0.0
    %815 = vmatprep.subr.mxu0 0.0
    %816 = vmatpush1.msra.mxu0 0.0
    %817 = vmatprep.subr.mxu0 0.0
    %818 = vmatpush1.msra.mxu0 0.0
    %819 = vmatprep.subr.mxu0 0.0
    %820 = vmatpush1.msra.mxu0 0.0
    %821 = vmatprep.subr.mxu0 0.0
    %822 = vmatpush1.msra.mxu0 0.0
    %823 = vmatprep.subr.mxu0 0.0
    %824 = vmatpush1.msra.mxu0 0.0
    %825 = vmatprep.subr.mxu0 0.0
    %826 = vmatpush1.msra.mxu0 0.0
    %827 = vmatprep.subr.mxu0 0.0
    %828 = vmatpush1.msra.mxu0 0.0
    %829 = vmatprep.subr.mxu0 0.0
    %830 = vmatpush1.msra.mxu0 0.0
    %831 = vmatprep.subr.mxu0 0.0
    %832 = vmatpush1.msra.mxu0 0.0
    %833 = vmatprep.subr.mxu0 0.0
    %834 = vmatpush1.msra.mxu0 0.0
    %835 = vmatprep.subr.mxu0 0.0
    %836 = vmatpush1.msra.mxu0 0.0
    %837 = vmatprep.subr.mxu0 0.0
    %838 = vmatpush1.msra.mxu0 0.0
    %839 = vmatprep.subr.mxu0 0.0
    %840 = vmatpush1.msra.mxu0 0.0
    %841 = vmatprep.subr.mxu0 0.0
    %842 = vmatpush1.msra.mxu0 0.0
    %843 = vmatprep.subr.mxu0 0.0
    %844 = vmatpush1.msra.mxu0 0.0
    %845 = vmatprep.subr.mxu0 0.0
    %846 = vmatpush1.msra.mxu0 0.0
    %847 = vmatprep.subr.mxu0 0.0
    %848 = vmatpush1.msra.mxu0 0.0
    %849 = vmatprep.subr.mxu0 0.0
    %850 = vmatpush1.msra.mxu0 0.0
    %851 = vmatprep.subr.mxu0 0.0
    %852 = vmatpush1.msra.mxu0 0.0
    %853 = vmatprep.subr.mxu0 0.0
    %854 = vmatpush1.msra.mxu0 0.0
    %855 = vmatprep.subr.mxu0 0.0
    %856 = vmatpush1.msra.mxu0 0.0
    %857 = vmatprep.subr.mxu0 0.0
    %858 = vmatpush1.msra.mxu0 0.0
    %859 = vmatprep.subr.mxu0 0.0
    %860 = vmatpush1.msra.mxu0 0.0
    %861 = vmatprep.subr.mxu0 0.0
    %862 = vmatpush1.msra.mxu0 0.0
    %863 = vmatprep.subr.mxu0 0.0
    %864 = vmatpush1.msra.mxu0 0.0
    %865 = vmatprep.subr.mxu0 0.0
    %866 = vmatpush1.msra.mxu0 0.0
    %867 = vmatprep.mubr.f32.mxu0 0.0
    %868 = vmatmul.mubr.f32.gmra.mrb[0].mxu0 %v794
    %v869 = vpop.f32.mrb[0].mxu0
    %v870 = vadd.f32 0.0, %v869
    %v871 = vpop.f32.mrb[0].mxu0
    %872 = vmatprep.mubr.f32.mxu0 0.0
    %873 = vmatmul.mubr.f32.gmra.mrb[0].mxu0 %v797
    %v874 = vpop.f32.mrb[0].mxu0
    %v875 = vadd.f32 0.0, %v874
    %v876 = vpop.f32.mrb[0].mxu0
    %877 = vdwg.mxu0
    %v879 = vsel %vm448, %v784, 0
    %v882 = vsel %vm448, %v789, 0
    %884 = vmatprep.subr.mxu0 0.0
    %885 = vmatpush1.msra.mxu0 %v39
    %886 = vmatprep.subr.mxu0 0.0
    %887 = vmatpush1.msra.mxu0 %v40
    %888 = vmatprep.subr.mxu0 0.0
    %889 = vmatpush1.msra.mxu0 %v41
    %890 = vmatprep.subr.mxu0 0.0
    %891 = vmatpush1.msra.mxu0 %v42
    %892 = vmatprep.subr.mxu0 0.0
    %893 = vmatpush1.msra.mxu0 %v43
    %894 = vmatprep.subr.mxu0 0.0
    %895 = vmatpush1.msra.mxu0 %v44
    %896 = vmatprep.subr.mxu0 0.0
    %897 = vmatpush1.msra.mxu0 %v45
    %898 = vmatprep.subr.mxu0 0.0
    %899 = vmatpush1.msra.mxu0 %v46
    %900 = vmatprep.subr.mxu0 0.0
    %901 = vmatpush1.msra.mxu0 %v47
    %902 = vmatprep.subr.mxu0 0.0
    %903 = vmatpush1.msra.mxu0 %v48
    %904 = vmatprep.subr.mxu0 0.0
    %905 = vmatpush1.msra.mxu0 %v49
    %906 = vmatprep.subr.mxu0 0.0
    %907 = vmatpush1.msra.mxu0 %v50
    %908 = vmatprep.subr.mxu0 0.0
    %909 = vmatpush1.msra.mxu0 %v51
    %910 = vmatprep.subr.mxu0 0.0
    %911 = vmatpush1.msra.mxu0 %v52
    %912 = vmatprep.subr.mxu0 0.0
    %913 = vmatpush1.msra.mxu0 %v53
    %914 = vmatprep.subr.mxu0 0.0
    %915 = vmatpush1.msra.mxu0 %v54
    %916 = vmatprep.subr.mxu0 0.0
    %917 = vmatpush1.msra.mxu0 %v55
    %918 = vmatprep.subr.mxu0 0.0
    %919 = vmatpush1.msra.mxu0 %v56
    %920 = vmatprep.subr.mxu0 0.0
    %921 = vmatpush1.msra.mxu0 %v57
    %922 = vmatprep.subr.mxu0 0.0
    %923 = vmatpush1.msra.mxu0 %v58
    %924 = vmatprep.subr.mxu0 0.0
    %925 = vmatpush1.msra.mxu0 %v59
    %926 = vmatprep.subr.mxu0 0.0
    %927 = vmatpush1.msra.mxu0 %v60
    %928 = vmatprep.subr.mxu0 0.0
    %929 = vmatpush1.msra.mxu0 %v61
    %930 = vmatprep.subr.mxu0 0.0
    %931 = vmatpush1.msra.mxu0 %v62
    %932 = vmatprep.subr.mxu0 0.0
    %933 = vmatpush1.msra.mxu0 %v63
    %934 = vmatprep.subr.mxu0 0.0
    %935 = vmatpush1.msra.mxu0 %v64
    %936 = vmatprep.subr.mxu0 0.0
    %937 = vmatpush1.msra.mxu0 %v65
    %938 = vmatprep.subr.mxu0 0.0
    %939 = vmatpush1.msra.mxu0 %v66
    %940 = vmatprep.subr.mxu0 0.0
    %941 = vmatpush1.msra.mxu0 %v67
    %942 = vmatprep.subr.mxu0 0.0
    %943 = vmatpush1.msra.mxu0 %v68
    %944 = vmatprep.subr.mxu0 0.0
    %945 = vmatpush1.msra.mxu0 %v69
    %946 = vmatprep.subr.mxu0 0.0
    %947 = vmatpush1.msra.mxu0 %v70
    %948 = vmatprep.mubr.f32.mxu0 %v781
    %949 = vmatmul.mubr.f32.gmra.mrb[0].mxu0 %v780
    %v950 = vpop.f32.mrb[0].mxu0
    %v951 = vadd.f32 %v870, %v950
    %v952 = vpop.f32.mrb[0].mxu0
    %953 = vmatprep.mubr.f32.mxu0 %v786
    %954 = vmatmul.mubr.f32.gmra.mrb[0].mxu0 %v785
    %v955 = vpop.f32.mrb[0].mxu0
    %v956 = vadd.f32 %v875, %v955
    %v957 = vpop.f32.mrb[0].mxu0
    %958 = vdwg.mxu0
    %959 = vmatprep.subr.mxu0 0.0
    %960 = vmatpush1.msra.mxu0 %v71
    %961 = vmatprep.subr.mxu0 0.0
    %962 = vmatpush1.msra.mxu0 %v72
    %963 = vmatprep.subr.mxu0 0.0
    %964 = vmatpush1.msra.mxu0 %v73
    %965 = vmatprep.subr.mxu0 0.0
    %966 = vmatpush1.msra.mxu0 %v74
    %967 = vmatprep.subr.mxu0 0.0
    %968 = vmatpush1.msra.mxu0 %v75
    %969 = vmatprep.subr.mxu0 0.0
    %970 = vmatpush1.msra.mxu0 %v76
    %971 = vmatprep.subr.mxu0 0.0
    %972 = vmatpush1.msra.mxu0 %v77
    %973 = vmatprep.subr.mxu0 0.0
    %974 = vmatpush1.msra.mxu0 %v78
    %975 = vmatprep.subr.mxu0 0.0
    %976 = vmatpush1.msra.mxu0 %v79
    %977 = vmatprep.subr.mxu0 0.0
    %978 = vmatpush1.msra.mxu0 %v80
    %979 = vmatprep.subr.mxu0 0.0
    %980 = vmatpush1.msra.mxu0 %v81
    %981 = vmatprep.subr.mxu0 0.0
    %982 = vmatpush1.msra.mxu0 %v82
    %983 = vmatprep.subr.mxu0 0.0
    %984 = vmatpush1.msra.mxu0 %v83
    %985 = vmatprep.subr.mxu0 0.0
    %986 = vmatpush1.msra.mxu0 %v84
    %987 = vmatprep.subr.mxu0 0.0
    %988 = vmatpush1.msra.mxu0 %v85
    %989 = vmatprep.subr.mxu0 0.0
    %990 = vmatpush1.msra.mxu0 %v86
    %991 = vmatprep.subr.mxu0 0.0
    %992 = vmatpush1.msra.mxu0 %v87
    %993 = vmatprep.subr.mxu0 0.0
    %994 = vmatpush1.msra.mxu0 %v88
    %995 = vmatprep.subr.mxu0 0.0
    %996 = vmatpush1.msra.mxu0 %v89
    %997 = vmatprep.subr.mxu0 0.0
    %998 = vmatpush1.msra.mxu0 %v90
    %999 = vmatprep.subr.mxu0 0.0
    %1000 = vmatpush1.msra.mxu0 %v91
    %1001 = vmatprep.subr.mxu0 0.0
    %1002 = vmatpush1.msra.mxu0 %v92
    %1003 = vmatprep.subr.mxu0 0.0
    %1004 = vmatpush1.msra.mxu0 %v93
    %1005 = vmatprep.subr.mxu0 0.0
    %1006 = vmatpush1.msra.mxu0 %v94
    %1007 = vmatprep.subr.mxu0 0.0
    %1008 = vmatpush1.msra.mxu0 %v95
    %1009 = vmatprep.subr.mxu0 0.0
    %1010 = vmatpush1.msra.mxu0 %v96
    %1011 = vmatprep.subr.mxu0 0.0
    %1012 = vmatpush1.msra.mxu0 %v97
    %1013 = vmatprep.subr.mxu0 0.0
    %1014 = vmatpush1.msra.mxu0 %v98
    %1015 = vmatprep.subr.mxu0 0.0
    %1016 = vmatpush1.msra.mxu0 %v99
    %1017 = vmatprep.subr.mxu0 0.0
    %1018 = vmatpush1.msra.mxu0 %v100
    %1019 = vmatprep.subr.mxu0 0.0
    %1020 = vmatpush1.msra.mxu0 %v101
    %1021 = vmatprep.subr.mxu0 0.0
    %1022 = vmatpush1.msra.mxu0 %v102
    %1023 = vmatprep.mubr.f32.mxu0 %v783
    %1024 = vmatmul.mubr.f32.gmra.mrb[0].mxu0 %v782
    %v1025 = vpop.f32.mrb[0].mxu0
    %v1026 = vadd.f32 %v951, %v1025
    %v1027 = vpop.f32.mrb[0].mxu0
    %1028 = vmatprep.mubr.f32.mxu0 %v788
    %1029 = vmatmul.mubr.f32.gmra.mrb[0].mxu0 %v787
    %v1030 = vpop.f32.mrb[0].mxu0
    %v1031 = vadd.f32 %v956, %v1030
    %v1032 = vpop.f32.mrb[0].mxu0
    %1033 = vdwg.mxu0
    %1034 = vmatprep.subr.mxu0 0.0
    %1035 = vmatpush1.msra.mxu0 %v103
    %1036 = vmatprep.subr.mxu0 0.0
    %1037 = vmatpush1.msra.mxu0 %v104
    %1038 = vmatprep.subr.mxu0 0.0
    %1039 = vmatpush1.msra.mxu0 %v105
    %1040 = vmatprep.subr.mxu0 0.0
    %1041 = vmatpush1.msra.mxu0 %v106
    %1042 = vmatprep.subr.mxu0 0.0
    %1043 = vmatpush1.msra.mxu0 0.0
    %1044 = vmatprep.subr.mxu0 0.0
    %1045 = vmatpush1.msra.mxu0 0.0
    %1046 = vmatprep.subr.mxu0 0.0
    %1047 = vmatpush1.msra.mxu0 0.0
    %1048 = vmatprep.subr.mxu0 0.0
    %1049 = vmatpush1.msra.mxu0 0.0
    %1050 = vmatprep.subr.mxu0 0.0
    %1051 = vmatpush1.msra.mxu0 0.0
    %1052 = vmatprep.subr.mxu0 0.0
    %1053 = vmatpush1.msra.mxu0 0.0
    %1054 = vmatprep.subr.mxu0 0.0
    %1055 = vmatpush1.msra.mxu0 0.0
    %1056 = vmatprep.subr.mxu0 0.0
    %1057 = vmatpush1.msra.mxu0 0.0
    %1058 = vmatprep.subr.mxu0 0.0
    %1059 = vmatpush1.msra.mxu0 0.0
    %1060 = vmatprep.subr.mxu0 0.0
    %1061 = vmatpush1.msra.mxu0 0.0
    %1062 = vmatprep.subr.mxu0 0.0
    %1063 = vmatpush1.msra.mxu0 0.0
    %1064 = vmatprep.subr.mxu0 0.0
    %1065 = vmatpush1.msra.mxu0 0.0
    %1066 = vmatprep.subr.mxu0 0.0
    %1067 = vmatpush1.msra.mxu0 0.0
    %1068 = vmatprep.subr.mxu0 0.0
    %1069 = vmatpush1.msra.mxu0 0.0
    %1070 = vmatprep.subr.mxu0 0.0
    %1071 = vmatpush1.msra.mxu0 0.0
    %1072 = vmatprep.subr.mxu0 0.0
    %1073 = vmatpush1.msra.mxu0 0.0
    %1074 = vmatprep.subr.mxu0 0.0
    %1075 = vmatpush1.msra.mxu0 0.0
    %1076 = vmatprep.subr.mxu0 0.0
    %1077 = vmatpush1.msra.mxu0 0.0
    %1078 = vmatprep.subr.mxu0 0.0
    %1079 = vmatpush1.msra.mxu0 0.0
    %1080 = vmatprep.subr.mxu0 0.0
    %1081 = vmatpush1.msra.mxu0 0.0
    %1082 = vmatprep.subr.mxu0 0.0
    %1083 = vmatpush1.msra.mxu0 0.0
    %1084 = vmatprep.subr.mxu0 0.0
    %1085 = vmatpush1.msra.mxu0 0.0
    %1086 = vmatprep.subr.mxu0 0.0
    %1087 = vmatpush1.msra.mxu0 0.0
    %1088 = vmatprep.subr.mxu0 0.0
    %1089 = vmatpush1.msra.mxu0 0.0
    %1090 = vmatprep.subr.mxu0 0.0
    %1091 = vmatpush1.msra.mxu0 0.0
    %1092 = vmatprep.subr.mxu0 0.0
    %1093 = vmatpush1.msra.mxu0 0.0
    %1094 = vmatprep.subr.mxu0 0.0
    %1095 = vmatpush1.msra.mxu0 0.0
    %1096 = vmatprep.subr.mxu0 0.0
    %1097 = vmatpush1.msra.mxu0 0.0
    %1098 = vmatprep.mubr.f32.mxu0 0.0
    %1099 = vmatmul.mubr.f32.gmra.mrb[0].mxu0 %v879
    %v1100 = vpop.f32.mrb[0].mxu0
    %v1101 = vadd.f32 %v1026, %v1100
    %v1102 = vpop.f32.mrb[0].mxu0
    %1103 = vmatprep.mubr.f32.mxu0 0.0
    %1104 = vmatmul.mubr.f32.gmra.mrb[0].mxu0 %v882
    %v1105 = vpop.f32.mrb[0].mxu0
    %v1106 = vadd.f32 %v1031, %v1105
    %v1107 = vpop.f32.mrb[0].mxu0
    %1108 = vdwg.mxu0
    %1109 = vst.msk [vmem:[#allocation2] sm:$0xff] %vm134, %v1101
    %1110 = vst.msk [vmem:[#allocation2 + $0x8] sm:$0xff] %vm134, %v1106
    // Predicated region
    $region30: #{tpu_custom_call.1} parent=1 // pred_check
      _
    $region31: #{tpu_custom_call.1} parent=1 // pred_check_branch
      %1112 = sbr.rel (0) target = $region33
    $region32: #{tpu_custom_call.1} parent=1 // pred_region
      %s1114 = ssub.s32 256, 256
      %1115 = vsyncadd [#allocation3], %s1114
      %s1116 = sshll.u32 [#allocation2], 4
      %s1117 = int_to_ptr.vmem [resolvable:$true] %s1116
      %1122 = dma.vmem_to_hbm [thread:$0]  %s1117, 256, %s7, [#allocation3], 128, 128, 8
    $region33: #{tpu_custom_call.1} parent=1 // pred_fallthru
      _
    // Predicated region
    $region34: #{tpu_custom_call.1} parent=1 // pred_check
      _
    $region35: #{tpu_custom_call.1} parent=1 // pred_check_branch
      %1124 = sbr.rel (0) target = $region37
    $region36: #{tpu_custom_call.1} parent=1 // pred_region
      %1125 = dma.done [#allocation3], 256
    $region37: #{tpu_custom_call.1} parent=1 // pred_fallthru
      _
    %1126 = vsyncpa [#allocation3], 1

</llo_original>
